<compile_context>
chip_gen: v7x
topology: tpu7x:2x2x1
jax: 0.10.0
libtpu: 0.0.40
codegen_flags: <defaults>
</compile_context>

<pallas_src>
import jax
import jax.numpy as jnp
from jax.experimental import pallas as pl
from jax.experimental.pallas import tpu as pltpu

# Small-but-lane-aligned synthetic sizes (module defaults are 256/512/256).
CHANNEL = 128    # `channel`
HIDDEN = 128     # `hidden_size`
ATTN = 128       # `attention_size`
BATCH = 64
PAD = 128        # lane padding for the 3-wide attention-logit Linear


def prepare_params(params):
    """One-time weight preparation (hoisted out of the per-call wrapper):
    cast matmul weights to bf16 and lane-pad the narrow (A, 3) head to 128
    output columns (only the first 3 are valid logits)."""
    bf16 = jnp.bfloat16
    A = params["wa2"].shape[0]
    wa2_pad = jnp.zeros((A, PAD), bf16).at[:, 0:3].set(params["wa2"].astype(bf16))
    ba2_pad = jnp.zeros((1, PAD), jnp.float32).at[:, 0:3].set(params["ba2"])
    return dict(
        wft=params["wft"].astype(bf16),      # (C, H)
        bft=params["bft"].astype(jnp.float32),
        wa1=params["wa1"].astype(bf16),      # (3H, A)
        ba1=params["ba1"].astype(jnp.float32),
        wa2=wa2_pad,                         # (A, 128)
        ba2=ba2_pad,                         # (1, 128)
    )


def multi_input_attention(x1, x2, x3, prep, *, tile_b=None):
    B, C = x1.shape
    H = prep["wft"].shape[1]
    A = prep["wa1"].shape[1]
    bf16 = jnp.bfloat16

    if tile_b is None:
        # At most 2 grid steps: 1 removes nearly all per-step fixed overhead
        # on single-TC chips; 2 lets the parallel batch axis shard across
        # v7x's two TensorCores.  Tiles must stay sublane-aligned (mult of 8).
        tile_b = B // 2 if (B % 16 == 0) else B
    assert B % tile_b == 0 and tile_b % 8 == 0, \
        "batch tile must divide batch and be a multiple of 8"
    nb = B // tile_b

    def kernel(x1_ref, x2_ref, x3_ref, wft_ref, bft_ref, wa1_ref, ba1_ref,
               wa2_ref, ba2_ref, out_ref):
        tb = tile_b

        # Sublane-concat x1|x2|x3 -> (3*tb, C) bf16 operand: one wft matmul
        # (single weight push, 3x the MXU row fill of three separate dots).
        # The f32 inputs are not kept live; they are re-loaded at the end.
        x_stack = jnp.concatenate(
            [x1_ref[...], x2_ref[...], x3_ref[...]], axis=0).astype(bf16)
        h = jnp.dot(x_stack, wft_ref[...],
                    preferred_element_type=jnp.float32) + bft_ref[...]

        # Lane-concat h1|h2|h3 -> (tb, 3H) in registers (H is 128-aligned),
        # then Linear(3H -> A) as a single K=3H matmul (MXU sums over K).
        hcat = jnp.concatenate(
            [h[0 * tb:1 * tb], h[1 * tb:2 * tb], h[2 * tb:3 * tb]], axis=1)
        pre = jnp.dot(hcat.astype(bf16), wa1_ref[...],
                      preferred_element_type=jnp.float32) + ba1_ref[...]
        act = jnp.tanh(pre)                                  # f32 on EUP/VPU

        # Linear(A -> 3), lane-padded to 128 cols; only first 3 are logits.
        logits_pad = jnp.dot(act.astype(bf16), wa2_ref[...],
                             preferred_element_type=jnp.float32) + ba2_ref[...]
        logits = logits_pad[:, 0:3]                          # never softmax pad

        # Softmax over the 3 logits; approx reciprocal keeps the tail on EUP.
        m = jnp.max(logits, axis=1, keepdims=True)
        e = jnp.exp(logits - m)
        w = e * pl.reciprocal(jnp.sum(e, axis=1, keepdims=True), approx=True)

        # Re-load the inputs at point of use (cheap vld) and write the
        # lane-dense [tb, 3*C] output slab.
        out_ref[:, 0 * C:1 * C] = x1_ref[...] * w[:, 0:1]
        out_ref[:, 1 * C:2 * C] = x2_ref[...] * w[:, 1:2]
        out_ref[:, 2 * C:3 * C] = x3_ref[...] * w[:, 2:3]

    x_spec = pl.BlockSpec((tile_b, C), lambda i: (i, 0))
    return pl.pallas_call(
        kernel,
        out_shape=jax.ShapeDtypeStruct((B, 3 * C), jnp.float32),
        grid_spec=pltpu.PrefetchScalarGridSpec(
            num_scalar_prefetch=0,
            grid=(nb,),
            in_specs=[
                x_spec,                                       # x1 (f32)
                x_spec,                                       # x2 (f32)
                x_spec,                                       # x3 (f32)
                pl.BlockSpec((C, H), lambda i: (0, 0)),       # wft (bf16)
                pl.BlockSpec((1, H), lambda i: (0, 0)),       # bft (f32)
                pl.BlockSpec((3 * H, A), lambda i: (0, 0)),   # wa1 (bf16)
                pl.BlockSpec((1, A), lambda i: (0, 0)),       # ba1 (f32)
                pl.BlockSpec((A, PAD), lambda i: (0, 0)),     # wa2 (bf16, padded)
                pl.BlockSpec((1, PAD), lambda i: (0, 0)),     # ba2 (f32, padded)
            ],
            out_specs=pl.BlockSpec((tile_b, 3 * C), lambda i: (i, 0)),
        ),
        compiler_params=pltpu.CompilerParams(
            # Batch tiles are independent: allow the (<=2-step) batch axis to
            # shard across v7x's two TensorCores; harmless on v5e/v6e.
            dimension_semantics=("parallel",)),
    )(x1, x2, x3, prep["wft"], prep["bft"], prep["wa1"], prep["ba1"],
      prep["wa2"], prep["ba2"])


def make_params(key, channel=CHANNEL, hidden=HIDDEN, attn=ATTN):
    k = jax.random.split(key, 6)
    s = 0.05
    return dict(
        wft=jax.random.normal(k[0], (channel, hidden), jnp.float32) * s,
        bft=jax.random.normal(k[1], (1, hidden), jnp.float32) * s,
        wa1=jax.random.normal(k[2], (3 * hidden, attn), jnp.float32) * s,
        ba1=jax.random.normal(k[3], (1, attn), jnp.float32) * s,
        wa2=jax.random.normal(k[4], (attn, 3), jnp.float32) * s,
        ba2=jax.random.normal(k[5], (1, 3), jnp.float32) * s,
    )


def reference(x1, x2, x3, p, *, bf16_matmuls=True):
    """Pure-JAX mirror of the PyTorch forward (optionally with the kernel's
    bf16-operand / f32-accumulate matmul precision)."""
    if bf16_matmuls:
        mm = lambda a, w: jnp.dot(a.astype(jnp.bfloat16), w.astype(jnp.bfloat16),
                                  preferred_element_type=jnp.float32)
    else:
        mm = lambda a, w: jnp.dot(a, w, preferred_element_type=jnp.float32)
    h1 = mm(x1, p["wft"]) + p["bft"]
    h2 = mm(x2, p["wft"]) + p["bft"]
    h3 = mm(x3, p["wft"]) + p["bft"]
    comb = jnp.concatenate([h1, h2, h3], axis=1)
    act = jnp.tanh(mm(comb, p["wa1"]) + p["ba1"])
    logits = mm(act, p["wa2"]) + p["ba2"]
    w = jax.nn.softmax(logits, axis=1)
    return jnp.concatenate(
        [x1 * w[:, 0:1], x2 * w[:, 1:2], x3 * w[:, 2:3]], axis=1)


if __name__ == "__main__":
    key = jax.random.PRNGKey(0)
    kx1, kx2, kx3, kp = jax.random.split(key, 4)
    x1 = jax.random.normal(kx1, (BATCH, CHANNEL), jnp.float32)
    x2 = jax.random.normal(kx2, (BATCH, CHANNEL), jnp.float32)
    x3 = jax.random.normal(kx3, (BATCH, CHANNEL), jnp.float32)
    params = make_params(kp)
    prep = prepare_params(params)   # once per parameter set, not per call

    out = jax.block_until_ready(multi_input_attention(x1, x2, x3, prep))

    # Tight check vs. a reference that mirrors the kernel's bf16-matmul /
    # f32-accumulate precision; loose check vs. the full-f32 PyTorch math.
    ref_bf = reference(x1, x2, x3, params, bf16_matmuls=True)
    ref_f32 = reference(x1, x2, x3, params, bf16_matmuls=False)
    assert out.shape == (BATCH, 3 * CHANNEL)
    assert jnp.allclose(out, ref_bf, atol=5e-3, rtol=5e-3), \
        float(jnp.max(jnp.abs(out - ref_bf)))
    assert jnp.allclose(out, ref_f32, atol=5e-2, rtol=5e-2), \
        float(jnp.max(jnp.abs(out - ref_f32)))
    print("KERNEL_OK")
</pallas_src>

<mosaic_0001>
module attributes {stable_mosaic.version = 11 : i64} {
  func.func @kernel(%arg0: i32, %arg1: memref<32x128xf32, #tpu.memory_space<vmem>>, %arg2: memref<32x128xf32, #tpu.memory_space<vmem>>, %arg3: memref<32x128xf32, #tpu.memory_space<vmem>>, %arg4: memref<128x128xbf16, #tpu.memory_space<vmem>>, %arg5: memref<1x128xf32, #tpu.memory_space<vmem>>, %arg6: memref<384x128xbf16, #tpu.memory_space<vmem>>, %arg7: memref<1x128xf32, #tpu.memory_space<vmem>>, %arg8: memref<128x128xbf16, #tpu.memory_space<vmem>>, %arg9: memref<1x128xf32, #tpu.memory_space<vmem>>, %arg10: memref<32x384xf32, #tpu.memory_space<vmem>>) attributes {dimension_semantics = [#tpu.dimension_semantics<parallel>], iteration_bounds = array<i64: 2>, scalar_prefetch = 0 : i64, scratch_operands = 0 : i64, tpu.core_type = #tpu.core_type<tc>, window_params = [{transform_indices = @transform_0, window_bounds = array<i64: 32, 128>}, {transform_indices = @transform_1, window_bounds = array<i64: 32, 128>}, {transform_indices = @transform_2, window_bounds = array<i64: 32, 128>}, {pipeline_mode = #tpu.pipeline_mode<synchronous>, transform_indices = @transform_3, window_bounds = array<i64: 128, 128>}, {pipeline_mode = #tpu.pipeline_mode<synchronous>, transform_indices = @transform_4, window_bounds = array<i64: 1, 128>}, {pipeline_mode = #tpu.pipeline_mode<synchronous>, transform_indices = @transform_5, window_bounds = array<i64: 384, 128>}, {pipeline_mode = #tpu.pipeline_mode<synchronous>, transform_indices = @transform_6, window_bounds = array<i64: 1, 128>}, {pipeline_mode = #tpu.pipeline_mode<synchronous>, transform_indices = @transform_7, window_bounds = array<i64: 128, 128>}, {pipeline_mode = #tpu.pipeline_mode<synchronous>, transform_indices = @transform_8, window_bounds = array<i64: 1, 128>}, {transform_indices = @transform_9, window_bounds = array<i64: 32, 384>}]} {
    %c0 = arith.constant 0 : index
    %c0_0 = arith.constant 0 : index
    %0 = vector.load %arg1[%c0, %c0_0] : memref<32x128xf32, #tpu.memory_space<vmem>>, vector<32x128xf32>
    %c0_1 = arith.constant 0 : index
    %c0_2 = arith.constant 0 : index
    %1 = vector.load %arg2[%c0_1, %c0_2] : memref<32x128xf32, #tpu.memory_space<vmem>>, vector<32x128xf32>
    %c0_3 = arith.constant 0 : index
    %c0_4 = arith.constant 0 : index
    %2 = vector.load %arg3[%c0_3, %c0_4] : memref<32x128xf32, #tpu.memory_space<vmem>>, vector<32x128xf32>
    %3 = tpu.concatenate %0, %1, %2 in 0 : vector<32x128xf32>, vector<32x128xf32>, vector<32x128xf32> -> vector<96x128xf32>
    %4 = arith.truncf %3 : vector<96x128xf32> to vector<96x128xbf16>
    %c0_5 = arith.constant 0 : index
    %c0_6 = arith.constant 0 : index
    %5 = vector.load %arg4[%c0_5, %c0_6] : memref<128x128xbf16, #tpu.memory_space<vmem>>, vector<128x128xbf16>
    %cst = arith.constant dense<0.000000e+00> : vector<96x128xf32>
    %6 = tpu.matmul %4, %5, %cst {dimension_numbers = #tpu.dot_dimension_numbers<[1], [0], [0], [1], [0, 0, 1, 1], [], []>} : vector<96x128xbf16>, vector<128x128xbf16>, vector<96x128xf32> -> vector<96x128xf32>
    %c0_7 = arith.constant 0 : index
    %c0_8 = arith.constant 0 : index
    %7 = vector.load %arg5[%c0_7, %c0_8] : memref<1x128xf32, #tpu.memory_space<vmem>>, vector<1x128xf32>
    %8 = vector.broadcast %7 : vector<1x128xf32> to vector<96x128xf32>
    %9 = arith.addf %6, %8 : vector<96x128xf32>
    %10 = vector.extract_strided_slice %9 {offsets = [0, 0], sizes = [32, 128], strides = [1, 1]} : vector<96x128xf32> to vector<32x128xf32>
    %11 = vector.extract_strided_slice %9 {offsets = [32, 0], sizes = [32, 128], strides = [1, 1]} : vector<96x128xf32> to vector<32x128xf32>
    %12 = vector.extract_strided_slice %9 {offsets = [64, 0], sizes = [32, 128], strides = [1, 1]} : vector<96x128xf32> to vector<32x128xf32>
    %13 = tpu.concatenate %10, %11, %12 in 1 : vector<32x128xf32>, vector<32x128xf32>, vector<32x128xf32> -> vector<32x384xf32>
    %14 = arith.truncf %13 : vector<32x384xf32> to vector<32x384xbf16>
    %c0_9 = arith.constant 0 : index
    %c0_10 = arith.constant 0 : index
    %15 = vector.load %arg6[%c0_9, %c0_10] : memref<384x128xbf16, #tpu.memory_space<vmem>>, vector<384x128xbf16>
    %cst_11 = arith.constant dense<0.000000e+00> : vector<32x128xf32>
    %16 = tpu.matmul %14, %15, %cst_11 {dimension_numbers = #tpu.dot_dimension_numbers<[1], [0], [0], [1], [0, 0, 1, 1], [], []>} : vector<32x384xbf16>, vector<384x128xbf16>, vector<32x128xf32> -> vector<32x128xf32>
    %c0_12 = arith.constant 0 : index
    %c0_13 = arith.constant 0 : index
    %17 = vector.load %arg7[%c0_12, %c0_13] : memref<1x128xf32, #tpu.memory_space<vmem>>, vector<1x128xf32>
    %18 = vector.broadcast %17 : vector<1x128xf32> to vector<32x128xf32>
    %19 = arith.addf %16, %18 : vector<32x128xf32>
    %20 = math.tanh %19 : vector<32x128xf32>
    %21 = arith.truncf %20 : vector<32x128xf32> to vector<32x128xbf16>
    %c0_14 = arith.constant 0 : index
    %c0_15 = arith.constant 0 : index
    %22 = vector.load %arg8[%c0_14, %c0_15] : memref<128x128xbf16, #tpu.memory_space<vmem>>, vector<128x128xbf16>
    %cst_16 = arith.constant dense<0.000000e+00> : vector<32x128xf32>
    %23 = tpu.matmul %21, %22, %cst_16 {dimension_numbers = #tpu.dot_dimension_numbers<[1], [0], [0], [1], [0, 0, 1, 1], [], []>} : vector<32x128xbf16>, vector<128x128xbf16>, vector<32x128xf32> -> vector<32x128xf32>
    %c0_17 = arith.constant 0 : index
    %c0_18 = arith.constant 0 : index
    %24 = vector.load %arg9[%c0_17, %c0_18] : memref<1x128xf32, #tpu.memory_space<vmem>>, vector<1x128xf32>
    %25 = vector.broadcast %24 : vector<1x128xf32> to vector<32x128xf32>
    %26 = arith.addf %23, %25 : vector<32x128xf32>
    %27 = vector.extract_strided_slice %26 {offsets = [0, 0], sizes = [32, 3], strides = [1, 1]} : vector<32x128xf32> to vector<32x3xf32>
    %cst_19 = arith.constant dense<0xFF800000> : vector<32xf32>
    %28 = vector.multi_reduction <maximumf>, %27, %cst_19 [1] : vector<32x3xf32> to vector<32xf32>
    %29 = vector.shape_cast %28 : vector<32xf32> to vector<32x1xf32>
    %30 = vector.broadcast %29 : vector<32x1xf32> to vector<32x3xf32>
    %31 = arith.subf %27, %30 : vector<32x3xf32>
    %32 = math.exp %31 : vector<32x3xf32>
    %cst_20 = arith.constant dense<0.000000e+00> : vector<32xf32>
    %33 = vector.multi_reduction <add>, %32, %cst_20 [1] : vector<32x3xf32> to vector<32xf32>
    %34 = vector.shape_cast %33 : vector<32xf32> to vector<32x1xf32>
    %35 = tpu.reciprocal %34 {approx = true} : vector<32x1xf32> -> vector<32x1xf32>
    %36 = vector.broadcast %35 : vector<32x1xf32> to vector<32x3xf32>
    %37 = arith.mulf %32, %36 : vector<32x3xf32>
    %c0_21 = arith.constant 0 : index
    %c0_22 = arith.constant 0 : index
    %38 = vector.load %arg1[%c0_21, %c0_22] : memref<32x128xf32, #tpu.memory_space<vmem>>, vector<32x128xf32>
    %39 = vector.extract_strided_slice %37 {offsets = [0, 0], sizes = [32, 1], strides = [1, 1]} : vector<32x3xf32> to vector<32x1xf32>
    %40 = vector.broadcast %39 : vector<32x1xf32> to vector<32x128xf32>
    %41 = arith.mulf %38, %40 : vector<32x128xf32>
    %c0_23 = arith.constant 0 : index
    %c0_24 = arith.constant 0 : index
    %42 = vector.load %arg10[%c0_23, %c0_24] : memref<32x384xf32, #tpu.memory_space<vmem>>, vector<32x128xf32>
    tpu.vector_store %arg10[%c0_23, %c0_24], %41 {strides = array<i32>} : memref<32x384xf32, #tpu.memory_space<vmem>>, vector<32x128xf32>,
    %c0_25 = arith.constant 0 : index
    %c0_26 = arith.constant 0 : index
    %43 = vector.load %arg2[%c0_25, %c0_26] : memref<32x128xf32, #tpu.memory_space<vmem>>, vector<32x128xf32>
    %44 = vector.extract_strided_slice %37 {offsets = [0, 1], sizes = [32, 1], strides = [1, 1]} : vector<32x3xf32> to vector<32x1xf32>
    %45 = vector.broadcast %44 : vector<32x1xf32> to vector<32x128xf32>
    %46 = arith.mulf %43, %45 : vector<32x128xf32>
    %c0_27 = arith.constant 0 : index
    %c128 = arith.constant 128 : index
    %47 = vector.load %arg10[%c0_27, %c128] : memref<32x384xf32, #tpu.memory_space<vmem>>, vector<32x128xf32>
    tpu.vector_store %arg10[%c0_27, %c128], %46 {strides = array<i32>} : memref<32x384xf32, #tpu.memory_space<vmem>>, vector<32x128xf32>,
    %c0_28 = arith.constant 0 : index
    %c0_29 = arith.constant 0 : index
    %48 = vector.load %arg3[%c0_28, %c0_29] : memref<32x128xf32, #tpu.memory_space<vmem>>, vector<32x128xf32>
    %49 = vector.extract_strided_slice %37 {offsets = [0, 2], sizes = [32, 1], strides = [1, 1]} : vector<32x3xf32> to vector<32x1xf32>
    %50 = vector.broadcast %49 : vector<32x1xf32> to vector<32x128xf32>
    %51 = arith.mulf %48, %50 : vector<32x128xf32>
    %c0_30 = arith.constant 0 : index
    %c256 = arith.constant 256 : index
    %52 = vector.load %arg10[%c0_30, %c256] : memref<32x384xf32, #tpu.memory_space<vmem>>, vector<32x128xf32>
    tpu.vector_store %arg10[%c0_30, %c256], %51 {strides = array<i32>} : memref<32x384xf32, #tpu.memory_space<vmem>>, vector<32x128xf32>,
    return
  }
  func.func @transform_0(%arg0: i32) -> (i32, i32) {
    %c0_i32 = arith.constant 0 : i32
    %c0_i32_0 = arith.constant 0 : i32
    return %arg0, %c0_i32 : i32, i32
  }
  func.func @transform_1(%arg0: i32) -> (i32, i32) {
    %c0_i32 = arith.constant 0 : i32
    %c0_i32_0 = arith.constant 0 : i32
    return %arg0, %c0_i32 : i32, i32
  }
  func.func @transform_2(%arg0: i32) -> (i32, i32) {
    %c0_i32 = arith.constant 0 : i32
    %c0_i32_0 = arith.constant 0 : i32
    return %arg0, %c0_i32 : i32, i32
  }
  func.func @transform_3(%arg0: i32) -> (i32, i32) {
    %c0_i32 = arith.constant 0 : i32
    %c0_i32_0 = arith.constant 0 : i32
    %c0_i32_1 = arith.constant 0 : i32
    return %c0_i32, %c0_i32_0 : i32, i32
  }
  func.func @transform_4(%arg0: i32) -> (i32, i32) {
    %c0_i32 = arith.constant 0 : i32
    %c0_i32_0 = arith.constant 0 : i32
    %c0_i32_1 = arith.constant 0 : i32
    return %c0_i32, %c0_i32_0 : i32, i32
  }
  func.func @transform_5(%arg0: i32) -> (i32, i32) {
    %c0_i32 = arith.constant 0 : i32
    %c0_i32_0 = arith.constant 0 : i32
    %c0_i32_1 = arith.constant 0 : i32
    return %c0_i32, %c0_i32_0 : i32, i32
  }
  func.func @transform_6(%arg0: i32) -> (i32, i32) {
    %c0_i32 = arith.constant 0 : i32
    %c0_i32_0 = arith.constant 0 : i32
    %c0_i32_1 = arith.constant 0 : i32
    return %c0_i32, %c0_i32_0 : i32, i32
  }
  func.func @transform_7(%arg0: i32) -> (i32, i32) {
    %c0_i32 = arith.constant 0 : i32
    %c0_i32_0 = arith.constant 0 : i32
    %c0_i32_1 = arith.constant 0 : i32
    return %c0_i32, %c0_i32_0 : i32, i32
  }
  func.func @transform_8(%arg0: i32) -> (i32, i32) {
    %c0_i32 = arith.constant 0 : i32
    %c0_i32_0 = arith.constant 0 : i32
    %c0_i32_1 = arith.constant 0 : i32
    return %c0_i32, %c0_i32_0 : i32, i32
  }
  func.func @transform_9(%arg0: i32) -> (i32, i32) {
    %c0_i32 = arith.constant 0 : i32
    %c0_i32_0 = arith.constant 0 : i32
    return %arg0, %c0_i32 : i32, i32
  }
}

</mosaic_0001>

<llo_original>
// kernel: tpu_custom_call.1
$region0: #{tpu_custom_call.1}
  #allocation0 [shape = 'u32[]', space=smem, size = 0x4, offset = 0x4, fixed_abs, tag = 'smem constant byte address 0x4 - core index']
  #allocation1 [shape = 'u32[144,128]{1,0:T(1,128)}', space=vmem, size = 0x12000, scoped, tag = 'internal scratch']
  %s0 = inlined_call_operand.hbm [shape: f32[64,128], index: 0, kind: input, shape index: {}]
  %s1 = inlined_call_operand.hbm [shape: f32[64,128], index: 1, kind: input, shape index: {}]
  %s2 = inlined_call_operand.hbm [shape: f32[64,128], index: 2, kind: input, shape index: {}]
  %s3 = inlined_call_operand.hbm [shape: bf16[128,128], index: 3, kind: input, shape index: {}]
  %s4 = inlined_call_operand.vmem [shape: f32[1,128], index: 4, kind: input, shape index: {}]
  %s5 = inlined_call_operand.hbm [shape: bf16[384,128], index: 5, kind: input, shape index: {}]
  %s6 = inlined_call_operand.vmem [shape: f32[1,128], index: 6, kind: input, shape index: {}]
  %s7 = inlined_call_operand.hbm [shape: bf16[128,128], index: 7, kind: input, shape index: {}]
  %s8 = inlined_call_operand.vmem [shape: f32[1,128], index: 8, kind: input, shape index: {}]
  %s9 = inlined_call_operand.hbm [shape: f32[64,384], index: 9, kind: output, shape index: {}]
  %s10 = sld [smem:[#allocation0]]
  $region93: #{tpu_custom_call.1} parent=0
    _
  %s12 = ssub.s32 1, %s10
  %s13 = scalar_select 0, %s12, %s10
  $region1: #{tpu_custom_call.1} parent=0
    #allocation2 [shape = 'u8[32768]{0}', space=vmem, size = 0x8000, scoped, tag = 'input window, operand 0']
    #allocation3 [shape = 's32[2]{0}', space=sflag, size = 0x8, scoped, tag = 'scoped memory for tpu_custom_call.1']
    #allocation4 [shape = 's32[2]{0}', space=sflag, size = 0x8, scoped, tag = 'scoped memory for tpu_custom_call.1']
    #allocation5 [shape = 'u8[32768]{0}', space=vmem, size = 0x8000, scoped, tag = 'input window, operand 1']
    #allocation6 [shape = 's32[2]{0}', space=sflag, size = 0x8, scoped, tag = 'scoped memory for tpu_custom_call.1']
    #allocation7 [shape = 'u8[32768]{0}', space=vmem, size = 0x8000, scoped, tag = 'input window, operand 2']
    #allocation8 [shape = 'u8[32768]{0}', space=vmem, size = 0x8000, scoped, tag = 'input window, operand 3, single buffered']
    #allocation9 [shape = 's32[1]{0}', space=sflag, size = 0x4, scoped, tag = 'scoped memory for tpu_custom_call.1']
    #allocation10 [shape = 'u8[98304]{0}', space=vmem, size = 0x18000, scoped, tag = 'input window, operand 5, single buffered']
    #allocation11 [shape = 'u8[32768]{0}', space=vmem, size = 0x8000, scoped, tag = 'input window, operand 7, single buffered']
    #allocation12 [shape = 's32[1]{0}', space=sflag, size = 0x4, scoped, tag = 'scoped memory for tpu_custom_call.1']
    #allocation13 [shape = 'u8[98304]{0}', space=vmem, size = 0x18000, scoped, tag = 'output window, operand 0']
    %14 = vsyncpa [#allocation3], 0
    %s15 = scalar_lea.sflag [#allocation3], 1
    %16 = vsyncpa %s15, 0
    %17 = vsyncpa [#allocation6], 0
    %s18 = scalar_lea.sflag [#allocation6], 1
    %19 = vsyncpa %s18, 0
    %20 = vsyncpa [#allocation9], 0
    %21 = vsyncpa [#allocation12], 0
    %22 = vsyncpa [#allocation4], 0
    %s23 = scalar_lea.sflag [#allocation4], 1
    %24 = vsyncpa %s23, 0
    loop: start=0, step=1, limit=4
    $region2: #{tpu_custom_call.1} parent=1 // loop_pre_header
      _
    $region3: #{tpu_custom_call.1} parent=1 // loop_header
      %s26 = sphi 0, %s30
      %p27 = scmp.ge.s32.totalorder %s26, 4
      %s36 = sphi 0, %s38
      %s39 = sphi 0, %s36
      %s40 = sphi 0, %s39
      %s56 = sphi 0, %s40
      %s62 = sphi 0, %s64
      %s65 = sphi 0, %s62
      %s66 = sphi 0, %s65
      %s82 = sphi 0, %s66
      %s88 = sphi 0, %s90
      %s91 = sphi 0, %s88
      %s92 = sphi 0, %s91
      %s108 = sphi 0, %s92
      %s112 = sphi 0, %s112
      %s114 = sphi 0, %s112
      %s115 = sphi 0, %s114
      %s129 = sphi 0, %s115
      %s133 = sphi 0, %s133
      %s135 = sphi 0, %s133
      %s136 = sphi 0, %s135
      %s150 = sphi 0, %s136
      %s154 = sphi 0, %s154
      %s156 = sphi 0, %s154
      %s157 = sphi 0, %s156
      %s171 = sphi 0, %s157
      %s175 = sphi 0, %s175
      %s177 = sphi 0, %s175
      %s178 = sphi 0, %s177
      %s192 = sphi 0, %s178
      %s196 = sphi 0, %s196
      %s198 = sphi 0, %s196
      %s199 = sphi 0, %s198
      %s213 = sphi 0, %s199
      %s217 = sphi 0, %s217
      %s219 = sphi 0, %s217
      %s220 = sphi 0, %s219
      %s234 = sphi 0, %s220
      %s240 = sphi 0, %s242
      %s243 = sphi 0, %s240
      %s244 = sphi 0, %s243
      %s260 = sphi 0, %s244
    $region4: #{tpu_custom_call.1} parent=1 // loop_header_branch
      %29 = sbr.rel (%p27) target = $region8
    $region5: #{tpu_custom_call.1} parent=1 // loop_body
      %s31 = ssub.s32 %s26, 1
      %s32 = ssub.s32 %s26, 2
      %s33 = sadd.s32 %s26, 1
      %s34 = ssub.s32 %s26, %s33
      %p35 = scmp.eq.s32.totalorder %s34, 0
      %s37 = sadd.s32 %s36, 1
      %s38 = scalar_select %p35, %s36, %s37
      %p41 = pneg %p35
      %p42 = scmp.eq.s32.totalorder %s26, 1
      %p43 = por %p41, %p42
      %p44 = scmp.ne.s32.totalorder %s36, %s39
      %p45 = scmp.eq.s32.totalorder %s26, 0
      %p46 = por %p44, %p45
      %p47 = scmp.ne.s32.totalorder %s36, %s39
      %p48 = scmp.eq.s32.totalorder %s31, 1
      %p49 = por %p47, %p48
      %p50 = scmp.ne.s32.totalorder %s39, %s40
      %p51 = scmp.eq.s32.totalorder %s31, 0
      %p52 = por %p50, %p51
      %p53 = scmp.ne.s32.totalorder %s39, %s40
      %p54 = scmp.eq.s32.totalorder %s32, 1
      %p55 = por %p53, %p54
      %p57 = scmp.ne.s32.totalorder %s40, %s56
      %p58 = scmp.eq.s32.totalorder %s32, 0
      %p59 = por %p57, %p58
      %s60 = ssub.s32 %s26, %s33
      %p61 = scmp.eq.s32.totalorder %s60, 0
      %s63 = sadd.s32 %s62, 1
      %s64 = scalar_select %p61, %s62, %s63
      %p67 = pneg %p61
      %p68 = scmp.eq.s32.totalorder %s26, 1
      %p69 = por %p67, %p68
      %p70 = scmp.ne.s32.totalorder %s62, %s65
      %p71 = scmp.eq.s32.totalorder %s26, 0
      %p72 = por %p70, %p71
      %p73 = scmp.ne.s32.totalorder %s62, %s65
      %p74 = scmp.eq.s32.totalorder %s31, 1
      %p75 = por %p73, %p74
      %p76 = scmp.ne.s32.totalorder %s65, %s66
      %p77 = scmp.eq.s32.totalorder %s31, 0
      %p78 = por %p76, %p77
      %p79 = scmp.ne.s32.totalorder %s65, %s66
      %p80 = scmp.eq.s32.totalorder %s32, 1
      %p81 = por %p79, %p80
      %p83 = scmp.ne.s32.totalorder %s66, %s82
      %p84 = scmp.eq.s32.totalorder %s32, 0
      %p85 = por %p83, %p84
      %s86 = ssub.s32 %s26, %s33
      %p87 = scmp.eq.s32.totalorder %s86, 0
      %s89 = sadd.s32 %s88, 1
      %s90 = scalar_select %p87, %s88, %s89
      %p93 = pneg %p87
      %p94 = scmp.eq.s32.totalorder %s26, 1
      %p95 = por %p93, %p94
      %p96 = scmp.ne.s32.totalorder %s88, %s91
      %p97 = scmp.eq.s32.totalorder %s26, 0
      %p98 = por %p96, %p97
      %p99 = scmp.ne.s32.totalorder %s88, %s91
      %p100 = scmp.eq.s32.totalorder %s31, 1
      %p101 = por %p99, %p100
      %p102 = scmp.ne.s32.totalorder %s91, %s92
      %p103 = scmp.eq.s32.totalorder %s31, 0
      %p104 = por %p102, %p103
      %p105 = scmp.ne.s32.totalorder %s91, %s92
      %p106 = scmp.eq.s32.totalorder %s32, 1
      %p107 = por %p105, %p106
      %p109 = scmp.ne.s32.totalorder %s92, %s108
      %p110 = scmp.eq.s32.totalorder %s32, 0
      %p111 = por %p109, %p110
      %s113 = sadd.s32 %s112, 1
      %p116 = scmp.eq.s32.totalorder %s26, 1
      %p117 = scmp.ne.s32.totalorder %s112, %s114
      %p118 = scmp.eq.s32.totalorder %s26, 0
      %p119 = por %p117, %p118
      %p120 = scmp.ne.s32.totalorder %s112, %s114
      %p121 = scmp.eq.s32.totalorder %s31, 1
      %p122 = por %p120, %p121
      %p123 = scmp.ne.s32.totalorder %s114, %s115
      %p124 = scmp.eq.s32.totalorder %s31, 0
      %p125 = por %p123, %p124
      %p126 = scmp.ne.s32.totalorder %s114, %s115
      %p127 = scmp.eq.s32.totalorder %s32, 1
      %p128 = por %p126, %p127
      %p130 = scmp.ne.s32.totalorder %s115, %s129
      %p131 = scmp.eq.s32.totalorder %s32, 0
      %p132 = por %p130, %p131
      %s134 = sadd.s32 %s133, 1
      %p137 = scmp.eq.s32.totalorder %s26, 1
      %p138 = scmp.ne.s32.totalorder %s133, %s135
      %p139 = scmp.eq.s32.totalorder %s26, 0
      %p140 = por %p138, %p139
      %p141 = scmp.ne.s32.totalorder %s133, %s135
      %p142 = scmp.eq.s32.totalorder %s31, 1
      %p143 = por %p141, %p142
      %p144 = scmp.ne.s32.totalorder %s135, %s136
      %p145 = scmp.eq.s32.totalorder %s31, 0
      %p146 = por %p144, %p145
      %p147 = scmp.ne.s32.totalorder %s135, %s136
      %p148 = scmp.eq.s32.totalorder %s32, 1
      %p149 = por %p147, %p148
      %p151 = scmp.ne.s32.totalorder %s136, %s150
      %p152 = scmp.eq.s32.totalorder %s32, 0
      %p153 = por %p151, %p152
      %s155 = sadd.s32 %s154, 1
      %p158 = scmp.eq.s32.totalorder %s26, 1
      %p159 = scmp.ne.s32.totalorder %s154, %s156
      %p160 = scmp.eq.s32.totalorder %s26, 0
      %p161 = por %p159, %p160
      %p162 = scmp.ne.s32.totalorder %s154, %s156
      %p163 = scmp.eq.s32.totalorder %s31, 1
      %p164 = por %p162, %p163
      %p165 = scmp.ne.s32.totalorder %s156, %s157
      %p166 = scmp.eq.s32.totalorder %s31, 0
      %p167 = por %p165, %p166
      %p168 = scmp.ne.s32.totalorder %s156, %s157
      %p169 = scmp.eq.s32.totalorder %s32, 1
      %p170 = por %p168, %p169
      %p172 = scmp.ne.s32.totalorder %s157, %s171
      %p173 = scmp.eq.s32.totalorder %s32, 0
      %p174 = por %p172, %p173
      %s176 = sadd.s32 %s175, 1
      %p179 = scmp.eq.s32.totalorder %s26, 1
      %p180 = scmp.ne.s32.totalorder %s175, %s177
      %p181 = scmp.eq.s32.totalorder %s26, 0
      %p182 = por %p180, %p181
      %p183 = scmp.ne.s32.totalorder %s175, %s177
      %p184 = scmp.eq.s32.totalorder %s31, 1
      %p185 = por %p183, %p184
      %p186 = scmp.ne.s32.totalorder %s177, %s178
      %p187 = scmp.eq.s32.totalorder %s31, 0
      %p188 = por %p186, %p187
      %p189 = scmp.ne.s32.totalorder %s177, %s178
      %p190 = scmp.eq.s32.totalorder %s32, 1
      %p191 = por %p189, %p190
      %p193 = scmp.ne.s32.totalorder %s178, %s192
      %p194 = scmp.eq.s32.totalorder %s32, 0
      %p195 = por %p193, %p194
      %s197 = sadd.s32 %s196, 1
      %p200 = scmp.eq.s32.totalorder %s26, 1
      %p201 = scmp.ne.s32.totalorder %s196, %s198
      %p202 = scmp.eq.s32.totalorder %s26, 0
      %p203 = por %p201, %p202
      %p204 = scmp.ne.s32.totalorder %s196, %s198
      %p205 = scmp.eq.s32.totalorder %s31, 1
      %p206 = por %p204, %p205
      %p207 = scmp.ne.s32.totalorder %s198, %s199
      %p208 = scmp.eq.s32.totalorder %s31, 0
      %p209 = por %p207, %p208
      %p210 = scmp.ne.s32.totalorder %s198, %s199
      %p211 = scmp.eq.s32.totalorder %s32, 1
      %p212 = por %p210, %p211
      %p214 = scmp.ne.s32.totalorder %s199, %s213
      %p215 = scmp.eq.s32.totalorder %s32, 0
      %p216 = por %p214, %p215
      %s218 = sadd.s32 %s217, 1
      %p221 = scmp.eq.s32.totalorder %s26, 1
      %p222 = scmp.ne.s32.totalorder %s217, %s219
      %p223 = scmp.eq.s32.totalorder %s26, 0
      %p224 = por %p222, %p223
      %p225 = scmp.ne.s32.totalorder %s217, %s219
      %p226 = scmp.eq.s32.totalorder %s31, 1
      %p227 = por %p225, %p226
      %p228 = scmp.ne.s32.totalorder %s219, %s220
      %p229 = scmp.eq.s32.totalorder %s31, 0
      %p230 = por %p228, %p229
      %p231 = scmp.ne.s32.totalorder %s219, %s220
      %p232 = scmp.eq.s32.totalorder %s32, 1
      %p233 = por %p231, %p232
      %p235 = scmp.ne.s32.totalorder %s220, %s234
      %p236 = scmp.eq.s32.totalorder %s32, 0
      %p237 = por %p235, %p236
      %s238 = ssub.s32 %s26, %s33
      %p239 = scmp.eq.s32.totalorder %s238, 0
      %s241 = sadd.s32 %s240, 1
      %s242 = scalar_select %p239, %s240, %s241
      %p245 = pneg %p239
      %p246 = scmp.eq.s32.totalorder %s26, 1
      %p247 = por %p245, %p246
      %p248 = scmp.ne.s32.totalorder %s240, %s243
      %p249 = scmp.eq.s32.totalorder %s26, 0
      %p250 = por %p248, %p249
      %p251 = scmp.ne.s32.totalorder %s240, %s243
      %p252 = scmp.eq.s32.totalorder %s31, 1
      %p253 = por %p251, %p252
      %p254 = scmp.ne.s32.totalorder %s243, %s244
      %p255 = scmp.eq.s32.totalorder %s31, 0
      %p256 = por %p254, %p255
      %p257 = scmp.ne.s32.totalorder %s243, %s244
      %p258 = scmp.eq.s32.totalorder %s32, 1
      %p259 = por %p257, %p258
      %p261 = scmp.ne.s32.totalorder %s244, %s260
      %p262 = scmp.eq.s32.totalorder %s32, 0
      %p263 = por %p261, %p262
      %p264 = scmp.le.s32.totalorder 1, %s26
      %p265 = scmp.lt.s32.totalorder %s26, 3
      %p266 = pnand %p264, %p265
      %p267 = pneg %p266
      // Predicated region
      $region9: #{tpu_custom_call.1} parent=5 // pred_check
        _
      $region10: #{tpu_custom_call.1} parent=5 // pred_check_branch
        %269 = sbr.rel (%p266) target = $region12
      $region11: #{tpu_custom_call.1} parent=5 // pred_region
        %s270 = ssub.s32 %s26, 1
        // Predicated region
        $region13: #{tpu_custom_call.1} parent=11 // pred_check
          %p271 = pneg %p125
        $region14: #{tpu_custom_call.1} parent=11 // pred_check_branch
          %273 = sbr.rel (%p271) target = $region16
        $region15: #{tpu_custom_call.1} parent=11 // pred_region
          %s275 = ssub.s32 1024, 1024
          %276 = vsyncadd [#allocation9], %s275
          %s277 = sshll.u32 [#allocation8], 4
          %s278 = int_to_ptr.vmem [resolvable:$true] %s277
          %283 = dma.hbm_to_vmem [thread:$0]  %s3, 1024, %s278, [#allocation9], 64, 64, 4
        $region16: #{tpu_custom_call.1} parent=11 // pred_fallthru
          _
        // Predicated region
        $region17: #{tpu_custom_call.1} parent=11 // pred_check
          %p284 = pneg %p146
        $region18: #{tpu_custom_call.1} parent=11 // pred_check_branch
          %286 = sbr.rel (%p284) target = $region20
        $region19: #{tpu_custom_call.1} parent=11 // pred_region
          _
        $region20: #{tpu_custom_call.1} parent=11 // pred_fallthru
          _
        // Predicated region
        $region21: #{tpu_custom_call.1} parent=11 // pred_check
          %p287 = pneg %p167
        $region22: #{tpu_custom_call.1} parent=11 // pred_check_branch
          %289 = sbr.rel (%p287) target = $region24
        $region23: #{tpu_custom_call.1} parent=11 // pred_region
          %s291 = ssub.s32 3072, 3072
          %292 = vsyncadd [#allocation9], %s291
          %s293 = sshll.u32 [#allocation10], 4
          %s294 = int_to_ptr.vmem [resolvable:$true] %s293
          %299 = dma.hbm_to_vmem [thread:$0]  %s5, 3072, %s294, [#allocation9], 64, 64, 4
        $region24: #{tpu_custom_call.1} parent=11 // pred_fallthru
          _
        // Predicated region
        $region25: #{tpu_custom_call.1} parent=11 // pred_check
          %p300 = pneg %p188
        $region26: #{tpu_custom_call.1} parent=11 // pred_check_branch
          %302 = sbr.rel (%p300) target = $region28
        $region27: #{tpu_custom_call.1} parent=11 // pred_region
          _
        $region28: #{tpu_custom_call.1} parent=11 // pred_fallthru
          _
        // Predicated region
        $region29: #{tpu_custom_call.1} parent=11 // pred_check
          %p303 = pneg %p209
        $region30: #{tpu_custom_call.1} parent=11 // pred_check_branch
          %305 = sbr.rel (%p303) target = $region32
        $region31: #{tpu_custom_call.1} parent=11 // pred_region
          %s307 = ssub.s32 1024, 1024
          %308 = vsyncadd [#allocation12], %s307
          %s309 = sshll.u32 [#allocation11], 4
          %s310 = int_to_ptr.vmem [resolvable:$true] %s309
          %315 = dma.hbm_to_vmem [thread:$0]  %s7, 1024, %s310, [#allocation12], 64, 64, 4
        $region32: #{tpu_custom_call.1} parent=11 // pred_fallthru
          _
        // Predicated region
        $region33: #{tpu_custom_call.1} parent=11 // pred_check
          %p316 = pneg %p230
        $region34: #{tpu_custom_call.1} parent=11 // pred_check_branch
          %318 = sbr.rel (%p316) target = $region36
        $region35: #{tpu_custom_call.1} parent=11 // pred_region
          _
        $region36: #{tpu_custom_call.1} parent=11 // pred_fallthru
          _
      $region12: #{tpu_custom_call.1} parent=5 // pred_fallthru
        _
      %p319 = scmp.lt.s32.totalorder %s26, 2
      // Predicated region
      $region37: #{tpu_custom_call.1} parent=5 // pred_check
        %p320 = pneg %p319
      $region38: #{tpu_custom_call.1} parent=5 // pred_check_branch
        %322 = sbr.rel (%p320) target = $region40
      $region39: #{tpu_custom_call.1} parent=5 // pred_region
        // Predicated region
        $region41: #{tpu_custom_call.1} parent=39 // pred_check
          %p323 = pneg %p46
        $region42: #{tpu_custom_call.1} parent=39 // pred_check_branch
          %325 = sbr.rel (%p323) target = $region44
        $region43: #{tpu_custom_call.1} parent=39 // pred_region
          %s326 = sand.u32 %s36, 1
          %s327 = scalar_lea.sflag [#allocation3], %s326
          %s328 = sand.u32 %s36, 1
          %s329 = smul.addr %s328, 32
          %s330 = scalar_lea.vmem [#allocation2], %s329
          %s331 = smul.u32 4, %s26
          %s333 = ssub.s32 512, 512
          %334 = vsyncadd %s327, %s333
          %s335 = smul.addr %s331, 128
          %s336 = scalar_lea.hbm %s0, %s335
          %s337 = sshll.u32 %s330, 4
          %s338 = int_to_ptr.vmem [resolvable:$true] %s337
          %343 = dma.hbm_to_vmem [thread:$0]  %s336, 512, %s338, %s327, 128, 128, 8
        $region44: #{tpu_custom_call.1} parent=39 // pred_fallthru
          _
        // Predicated region
        $region45: #{tpu_custom_call.1} parent=39 // pred_check
          %p344 = pneg %p72
        $region46: #{tpu_custom_call.1} parent=39 // pred_check_branch
          %346 = sbr.rel (%p344) target = $region48
        $region47: #{tpu_custom_call.1} parent=39 // pred_region
          %s347 = sand.u32 %s26, 1
          %s348 = scalar_lea.sflag [#allocation6], %s347
          %s349 = sand.u32 %s62, 1
          %s350 = smul.addr %s349, 32
          %s351 = scalar_lea.vmem [#allocation5], %s350
          %s352 = smul.u32 4, %s26
          %s354 = ssub.s32 512, 512
          %355 = vsyncadd %s348, %s354
          %s356 = smul.addr %s352, 128
          %s357 = scalar_lea.hbm %s1, %s356
          %s358 = sshll.u32 %s351, 4
          %s359 = int_to_ptr.vmem [resolvable:$true] %s358
          %364 = dma.hbm_to_vmem [thread:$0]  %s357, 512, %s359, %s348, 128, 128, 8
        $region48: #{tpu_custom_call.1} parent=39 // pred_fallthru
          _
        // Predicated region
        $region49: #{tpu_custom_call.1} parent=39 // pred_check
          %p365 = pneg %p98
        $region50: #{tpu_custom_call.1} parent=39 // pred_check_branch
          %367 = sbr.rel (%p365) target = $region52
        $region51: #{tpu_custom_call.1} parent=39 // pred_region
          %s368 = sand.u32 %s26, 1
          %s369 = scalar_lea.sflag [#allocation6], %s368
          %s370 = sand.u32 %s88, 1
          %s371 = smul.addr %s370, 32
          %s372 = scalar_lea.vmem [#allocation7], %s371
          %s373 = smul.u32 4, %s26
          %s375 = ssub.s32 512, 512
          %376 = vsyncadd %s369, %s375
          %s377 = smul.addr %s373, 128
          %s378 = scalar_lea.hbm %s2, %s377
          %s379 = sshll.u32 %s372, 4
          %s380 = int_to_ptr.vmem [resolvable:$true] %s379
          %385 = dma.hbm_to_vmem [thread:$0]  %s378, 512, %s380, %s369, 128, 128, 8
        $region52: #{tpu_custom_call.1} parent=39 // pred_fallthru
          _
      $region40: #{tpu_custom_call.1} parent=5 // pred_fallthru
        _
      %p386 = scmp.le.s32.totalorder 1, %s26
      %p387 = scmp.lt.s32.totalorder %s26, 3
      %p388 = pnand %p386, %p387
      %p389 = pneg %p388
      // Predicated region
      $region53: #{tpu_custom_call.1} parent=5 // pred_check
        _
      $region54: #{tpu_custom_call.1} parent=5 // pred_check_branch
        %391 = sbr.rel (%p388) target = $region56
      $region55: #{tpu_custom_call.1} parent=5 // pred_region
        %s392 = ssub.s32 %s26, 1
        %s393 = sand.u32 %s39, 1
        %s394 = scalar_lea.sflag [#allocation3], %s393
        %s395 = sand.u32 %s39, 1
        %s396 = smul.addr %s395, 32
        %s397 = scalar_lea.vmem [#allocation2], %s396
        // Predicated region
        $region57: #{tpu_custom_call.1} parent=55 // pred_check
          %p398 = pneg %p52
        $region58: #{tpu_custom_call.1} parent=55 // pred_check_branch
          %400 = sbr.rel (%p398) target = $region60
        $region59: #{tpu_custom_call.1} parent=55 // pred_region
          %401 = dma.done %s394, 512
        $region60: #{tpu_custom_call.1} parent=55 // pred_fallthru
          _
        %s402 = sand.u32 %s31, 1
        %s403 = scalar_lea.sflag [#allocation6], %s402
        %s404 = sand.u32 %s65, 1
        %s405 = smul.addr %s404, 32
        %s406 = scalar_lea.vmem [#allocation5], %s405
        // Predicated region
        $region61: #{tpu_custom_call.1} parent=55 // pred_check
          %p407 = pneg %p78
        $region62: #{tpu_custom_call.1} parent=55 // pred_check_branch
          %409 = sbr.rel (%p407) target = $region64
        $region63: #{tpu_custom_call.1} parent=55 // pred_region
          %410 = dma.done %s403, 512
        $region64: #{tpu_custom_call.1} parent=55 // pred_fallthru
          _
        %s411 = sand.u32 %s31, 1
        %s412 = scalar_lea.sflag [#allocation6], %s411
        %s413 = sand.u32 %s91, 1
        %s414 = smul.addr %s413, 32
        %s415 = scalar_lea.vmem [#allocation7], %s414
        // Predicated region
        $region65: #{tpu_custom_call.1} parent=55 // pred_check
          %p416 = pneg %p104
        $region66: #{tpu_custom_call.1} parent=55 // pred_check_branch
          %418 = sbr.rel (%p416) target = $region68
        $region67: #{tpu_custom_call.1} parent=55 // pred_region
          %419 = dma.done %s412, 512
        $region68: #{tpu_custom_call.1} parent=55 // pred_fallthru
          _
        // Predicated region
        $region69: #{tpu_custom_call.1} parent=55 // pred_check
          %p420 = pneg %p125
        $region70: #{tpu_custom_call.1} parent=55 // pred_check_branch
          %422 = sbr.rel (%p420) target = $region72
        $region71: #{tpu_custom_call.1} parent=55 // pred_region
          %423 = dma.done [#allocation9], 1024
        $region72: #{tpu_custom_call.1} parent=55 // pred_fallthru
          _
        // Predicated region
        $region73: #{tpu_custom_call.1} parent=55 // pred_check
          %p424 = pneg %p167
        $region74: #{tpu_custom_call.1} parent=55 // pred_check_branch
          %426 = sbr.rel (%p424) target = $region76
        $region75: #{tpu_custom_call.1} parent=55 // pred_region
          %427 = dma.done [#allocation9], 3072
        $region76: #{tpu_custom_call.1} parent=55 // pred_fallthru
          _
        // Predicated region
        $region77: #{tpu_custom_call.1} parent=55 // pred_check
          %p428 = pneg %p209
        $region78: #{tpu_custom_call.1} parent=55 // pred_check_branch
          %430 = sbr.rel (%p428) target = $region80
        $region79: #{tpu_custom_call.1} parent=55 // pred_region
          %431 = dma.done [#allocation12], 1024
        $region80: #{tpu_custom_call.1} parent=55 // pred_fallthru
          _
        %s432 = sand.u32 %s39, 1
        %s433 = scalar_lea.sflag [#allocation3], %s432
        %s434 = sand.u32 %s39, 1
        %s435 = smul.addr %s434, 32
        %s436 = scalar_lea.vmem [#allocation2], %s435
        %p437 = pneg %p52
        %p438 = pneg %p49
        %s439 = sand.u32 %s31, 1
        %s440 = scalar_lea.sflag [#allocation6], %s439
        %s441 = sand.u32 %s65, 1
        %s442 = smul.addr %s441, 32
        %s443 = scalar_lea.vmem [#allocation5], %s442
        %p444 = pneg %p78
        %p445 = pneg %p75
        %s446 = sand.u32 %s31, 1
        %s447 = scalar_lea.sflag [#allocation6], %s446
        %s448 = sand.u32 %s91, 1
        %s449 = smul.addr %s448, 32
        %s450 = scalar_lea.vmem [#allocation7], %s449
        %p451 = pneg %p104
        %p452 = pneg %p101
        %p453 = pneg %p125
        %p454 = pneg %p122
        %p455 = pneg %p146
        %p456 = pneg %p143
        %p457 = pneg %p167
        %p458 = pneg %p164
        %p459 = pneg %p188
        %p460 = pneg %p185
        %p461 = pneg %p209
        %p462 = pneg %p206
        %p463 = pneg %p230
        %p464 = pneg %p227
        %p465 = pneg %p256
        %p466 = pneg %p253
        %s467 = sand.u32 %s243, 1
        %s468 = scalar_lea.sflag [#allocation4], %s467
        %s469 = sand.u32 %s243, 1
        %s470 = smul.addr %s469, 96
        %s471 = scalar_lea.vmem [#allocation13], %s470
        %s472 = smul.u32 4, %s31
        %s473 = smul.u32 4, %s31
        %s474 = smul.u32 4, %s31
        %s475 = smul.u32 4, %s31
        %v477 = vld [vmem:[%s397] sm:$0xff]
        %v478 = vld [vmem:[%s397 + $0x8] sm:$0xff]
        %v479 = vld [vmem:[%s397 + $0x10] sm:$0xff]
        %v480 = vld [vmem:[%s397 + $0x18] sm:$0xff]
        %v481 = vld [vmem:[%s406] sm:$0xff]
        %v482 = vld [vmem:[%s406 + $0x8] sm:$0xff]
        %v483 = vld [vmem:[%s406 + $0x10] sm:$0xff]
        %v484 = vld [vmem:[%s406 + $0x18] sm:$0xff]
        %v485 = vld [vmem:[%s415] sm:$0xff]
        %v486 = vld [vmem:[%s415 + $0x8] sm:$0xff]
        %v487 = vld [vmem:[%s415 + $0x10] sm:$0xff]
        %v488 = vld [vmem:[%s415 + $0x18] sm:$0xff]
        %v489 = vpack.c.bf16 %v478, %v477
        %v490 = vpack.c.bf16 %v480, %v479
        %v491 = vpack.c.bf16 %v482, %v481
        %v492 = vpack.c.bf16 %v484, %v483
        %v493 = vpack.c.bf16 %v486, %v485
        %v494 = vpack.c.bf16 %v488, %v487
        %v495 = vld [vmem:[#allocation8] sm:$0xf]
        %v496 = vld [vmem:[#allocation8 + $0x4] sm:$0xf]
        %v497 = vld [vmem:[#allocation8 + $0x8] sm:$0xf]
        %v498 = vld [vmem:[#allocation8 + $0xc] sm:$0xf]
        %v499 = vld [vmem:[#allocation8 + $0x10] sm:$0xf]
        %v500 = vld [vmem:[#allocation8 + $0x14] sm:$0xf]
        %v501 = vld [vmem:[#allocation8 + $0x18] sm:$0xf]
        %v502 = vld [vmem:[#allocation8 + $0x1c] sm:$0xf]
        %v503 = vld [vmem:[#allocation8 + $0x20] sm:$0xf]
        %v504 = vld [vmem:[#allocation8 + $0x24] sm:$0xf]
        %v505 = vld [vmem:[#allocation8 + $0x28] sm:$0xf]
        %v506 = vld [vmem:[#allocation8 + $0x2c] sm:$0xf]
        %v507 = vld [vmem:[#allocation8 + $0x30] sm:$0xf]
        %v508 = vld [vmem:[#allocation8 + $0x34] sm:$0xf]
        %v509 = vld [vmem:[#allocation8 + $0x38] sm:$0xf]
        %v510 = vld [vmem:[#allocation8 + $0x3c] sm:$0xf]
        %v511 = vld [vmem:[%s4] sm:$0x1]
        %v513 = vlaneseq
        %v514 = vshrl.u32 %v513, 7
        %v515 = vsub.s32 0, %v514
        %v516 = vrot.slane %v511, %v515
        %v534 = vunpack.c.l.b16 %v495
        %v535 = vunpack.c.l.b16 %v496
        %v536 = vunpack.c.l.b16 %v497
        %v537 = vunpack.c.l.b16 %v498
        %v538 = vunpack.c.l.b16 %v499
        %v539 = vunpack.c.l.b16 %v500
        %v540 = vunpack.c.l.b16 %v501
        %v541 = vunpack.c.l.b16 %v502
        %v542 = vunpack.c.l.b16 %v503
        %v543 = vunpack.c.l.b16 %v504
        %v544 = vunpack.c.l.b16 %v505
        %v545 = vunpack.c.l.b16 %v506
        %v546 = vunpack.c.l.b16 %v507
        %v547 = vunpack.c.l.b16 %v508
        %v548 = vunpack.c.l.b16 %v509
        %v549 = vunpack.c.l.b16 %v510
        %v550 = vpack.c.b16 %v535, %v534
        %v551 = vpack.c.b16 %v537, %v536
        %v552 = vpack.c.b16 %v539, %v538
        %v553 = vpack.c.b16 %v541, %v540
        %v554 = vpack.c.b16 %v543, %v542
        %v555 = vpack.c.b16 %v545, %v544
        %v556 = vpack.c.b16 %v547, %v546
        %v557 = vpack.c.b16 %v549, %v548
        %566 = vmatprep.subr.bf16.mxu0 0
        %567 = vmatpush1.bf16.msra.mxu0 %v550
        %568 = vmatprep.subr.bf16.mxu0 0
        %569 = vmatpush1.bf16.msra.mxu0 %v551
        %570 = vmatprep.subr.bf16.mxu0 0
        %571 = vmatpush1.bf16.msra.mxu0 %v552
        %572 = vmatprep.subr.bf16.mxu0 0
        %573 = vmatpush1.bf16.msra.mxu0 %v553
        %574 = vmatprep.subr.bf16.mxu0 0
        %575 = vmatpush1.bf16.msra.mxu0 %v554
        %576 = vmatprep.subr.bf16.mxu0 0
        %577 = vmatpush1.bf16.msra.mxu0 %v555
        %578 = vmatprep.subr.bf16.mxu0 0
        %579 = vmatpush1.bf16.msra.mxu0 %v556
        %580 = vmatprep.subr.bf16.mxu0 0
        %581 = vmatpush1.bf16.msra.mxu0 %v557
        %582 = vmatprep.subr.bf16.mxu0 0
        %583 = vmatpush1.bf16.msra.mxu0 0
        %584 = vmatprep.subr.bf16.mxu0 0
        %585 = vmatpush1.bf16.msra.mxu0 0
        %586 = vmatprep.subr.bf16.mxu0 0
        %587 = vmatpush1.bf16.msra.mxu0 0
        %588 = vmatprep.subr.bf16.mxu0 0
        %589 = vmatpush1.bf16.msra.mxu0 0
        %590 = vmatprep.subr.bf16.mxu0 0
        %591 = vmatpush1.bf16.msra.mxu0 0
        %592 = vmatprep.subr.bf16.mxu0 0
        %593 = vmatpush1.bf16.msra.mxu0 0
        %594 = vmatprep.subr.bf16.mxu0 0
        %595 = vmatpush1.bf16.msra.mxu0 0
        %596 = vmatprep.subr.bf16.mxu0 0
        %597 = vmatpush1.bf16.msra.mxu0 0
        %598 = vmatprep.mubr.bf16.mxu0 0
        %599 = vmatmul.mubr.bf16.gmra.mrb[0].mxu0 %v489
        %v600 = vpop.f32.mrb[0].mxu0
        %v601 = vadd.f32 %v516, %v600
        %v602 = vpop.f32.mrb[0].mxu0
        %v603 = vpop.f32.mrb[0].mxu0
        %v604 = vadd.f32 %v516, %v603
        %v605 = vpop.f32.mrb[0].mxu0
        %606 = vmatprep.mubr.bf16.mxu0 0
        %607 = vmatmul.mubr.bf16.gmra.mrb[0].mxu0 %v490
        %v608 = vpop.f32.mrb[0].mxu0
        %v609 = vadd.f32 %v516, %v608
        %v610 = vpop.f32.mrb[0].mxu0
        %v611 = vpop.f32.mrb[0].mxu0
        %v612 = vadd.f32 %v516, %v611
        %v613 = vpop.f32.mrb[0].mxu0
        %614 = vmatprep.mubr.bf16.mxu0 0
        %615 = vmatmul.mubr.bf16.gmra.mrb[0].mxu0 %v491
        %v616 = vpop.f32.mrb[0].mxu0
        %v617 = vadd.f32 %v516, %v616
        %v618 = vpop.f32.mrb[0].mxu0
        %v619 = vpop.f32.mrb[0].mxu0
        %v620 = vadd.f32 %v516, %v619
        %v621 = vpop.f32.mrb[0].mxu0
        %622 = vmatprep.mubr.bf16.mxu0 0
        %623 = vmatmul.mubr.bf16.gmra.mrb[0].mxu0 %v492
        %v624 = vpop.f32.mrb[0].mxu0
        %v625 = vadd.f32 %v516, %v624
        %v626 = vpop.f32.mrb[0].mxu0
        %v627 = vpop.f32.mrb[0].mxu0
        %v628 = vadd.f32 %v516, %v627
        %v629 = vpop.f32.mrb[0].mxu0
        %630 = vmatprep.mubr.bf16.mxu0 0
        %631 = vmatmul.mubr.bf16.gmra.mrb[0].mxu0 %v493
        %v632 = vpop.f32.mrb[0].mxu0
        %v633 = vadd.f32 %v516, %v632
        %v634 = vpop.f32.mrb[0].mxu0
        %v635 = vpop.f32.mrb[0].mxu0
        %v636 = vadd.f32 %v516, %v635
        %v637 = vpop.f32.mrb[0].mxu0
        %638 = vmatprep.mubr.bf16.mxu0 0
        %639 = vmatmul.mubr.bf16.gmra.mrb[0].mxu0 %v494
        %v640 = vpop.f32.mrb[0].mxu0
        %v641 = vadd.f32 %v516, %v640
        %v642 = vpop.f32.mrb[0].mxu0
        %v643 = vpop.f32.mrb[0].mxu0
        %v644 = vadd.f32 %v516, %v643
        %v645 = vpop.f32.mrb[0].mxu0
        %646 = vdwg.mxu0
        %v647 = vpack.c.bf16 %v604, %v601
        %v648 = vpack.c.bf16 %v620, %v617
        %v649 = vpack.c.bf16 %v636, %v633
        %v650 = vpack.c.bf16 %v612, %v609
        %v651 = vpack.c.bf16 %v628, %v625
        %v652 = vpack.c.bf16 %v644, %v641
        %v653 = vld [vmem:[#allocation10] sm:$0xf]
        %v654 = vld [vmem:[#allocation10 + $0x4] sm:$0xf]
        %v655 = vld [vmem:[#allocation10 + $0x8] sm:$0xf]
        %v656 = vld [vmem:[#allocation10 + $0xc] sm:$0xf]
        %v657 = vld [vmem:[#allocation10 + $0x10] sm:$0xf]
        %v658 = vld [vmem:[#allocation10 + $0x14] sm:$0xf]
        %v659 = vld [vmem:[#allocation10 + $0x18] sm:$0xf]
        %v660 = vld [vmem:[#allocation10 + $0x1c] sm:$0xf]
        %v661 = vld [vmem:[#allocation10 + $0x20] sm:$0xf]
        %v662 = vld [vmem:[#allocation10 + $0x24] sm:$0xf]
        %v663 = vld [vmem:[#allocation10 + $0x28] sm:$0xf]
        %v664 = vld [vmem:[#allocation10 + $0x2c] sm:$0xf]
        %v665 = vld [vmem:[#allocation10 + $0x30] sm:$0xf]
        %v666 = vld [vmem:[#allocation10 + $0x34] sm:$0xf]
        %v667 = vld [vmem:[#allocation10 + $0x38] sm:$0xf]
        %v668 = vld [vmem:[#allocation10 + $0x3c] sm:$0xf]
        %v669 = vld [vmem:[#allocation10 + $0x40] sm:$0xf]
        %v670 = vld [vmem:[#allocation10 + $0x44] sm:$0xf]
        %v671 = vld [vmem:[#allocation10 + $0x48] sm:$0xf]
        %v672 = vld [vmem:[#allocation10 + $0x4c] sm:$0xf]
        %v673 = vld [vmem:[#allocation10 + $0x50] sm:$0xf]
        %v674 = vld [vmem:[#allocation10 + $0x54] sm:$0xf]
        %v675 = vld [vmem:[#allocation10 + $0x58] sm:$0xf]
        %v676 = vld [vmem:[#allocation10 + $0x5c] sm:$0xf]
        %v677 = vld [vmem:[#allocation10 + $0x60] sm:$0xf]
        %v678 = vld [vmem:[#allocation10 + $0x64] sm:$0xf]
        %v679 = vld [vmem:[#allocation10 + $0x68] sm:$0xf]
        %v680 = vld [vmem:[#allocation10 + $0x6c] sm:$0xf]
        %v681 = vld [vmem:[#allocation10 + $0x70] sm:$0xf]
        %v682 = vld [vmem:[#allocation10 + $0x74] sm:$0xf]
        %v683 = vld [vmem:[#allocation10 + $0x78] sm:$0xf]
        %v684 = vld [vmem:[#allocation10 + $0x7c] sm:$0xf]
        %v685 = vld [vmem:[#allocation10 + $0x80] sm:$0xf]
        %v686 = vld [vmem:[#allocation10 + $0x84] sm:$0xf]
        %v687 = vld [vmem:[#allocation10 + $0x88] sm:$0xf]
        %v688 = vld [vmem:[#allocation10 + $0x8c] sm:$0xf]
        %v689 = vld [vmem:[#allocation10 + $0x90] sm:$0xf]
        %v690 = vld [vmem:[#allocation10 + $0x94] sm:$0xf]
        %v691 = vld [vmem:[#allocation10 + $0x98] sm:$0xf]
        %v692 = vld [vmem:[#allocation10 + $0x9c] sm:$0xf]
        %v693 = vld [vmem:[#allocation10 + $0xa0] sm:$0xf]
        %v694 = vld [vmem:[#allocation10 + $0xa4] sm:$0xf]
        %v695 = vld [vmem:[#allocation10 + $0xa8] sm:$0xf]
        %v696 = vld [vmem:[#allocation10 + $0xac] sm:$0xf]
        %v697 = vld [vmem:[#allocation10 + $0xb0] sm:$0xf]
        %v698 = vld [vmem:[#allocation10 + $0xb4] sm:$0xf]
        %v699 = vld [vmem:[#allocation10 + $0xb8] sm:$0xf]
        %v700 = vld [vmem:[#allocation10 + $0xbc] sm:$0xf]
        %v701 = vld [vmem:[%s6] sm:$0x1]
        %v703 = vlaneseq
        %v704 = vshrl.u32 %v703, 7
        %v705 = vsub.s32 0, %v704
        %v706 = vrot.slane %v701, %v705
        %v756 = vunpack.c.l.b16 %v653
        %v757 = vunpack.c.l.b16 %v654
        %v758 = vunpack.c.l.b16 %v655
        %v759 = vunpack.c.l.b16 %v656
        %v760 = vunpack.c.l.b16 %v657
        %v761 = vunpack.c.l.b16 %v658
        %v762 = vunpack.c.l.b16 %v659
        %v763 = vunpack.c.l.b16 %v660
        %v764 = vunpack.c.l.b16 %v661
        %v765 = vunpack.c.l.b16 %v662
        %v766 = vunpack.c.l.b16 %v663
        %v767 = vunpack.c.l.b16 %v664
        %v768 = vunpack.c.l.b16 %v665
        %v769 = vunpack.c.l.b16 %v666
        %v770 = vunpack.c.l.b16 %v667
        %v771 = vunpack.c.l.b16 %v668
        %v772 = vunpack.c.l.b16 %v669
        %v773 = vunpack.c.l.b16 %v670
        %v774 = vunpack.c.l.b16 %v671
        %v775 = vunpack.c.l.b16 %v672
        %v776 = vunpack.c.l.b16 %v673
        %v777 = vunpack.c.l.b16 %v674
        %v778 = vunpack.c.l.b16 %v675
        %v779 = vunpack.c.l.b16 %v676
        %v780 = vunpack.c.l.b16 %v677
        %v781 = vunpack.c.l.b16 %v678
        %v782 = vunpack.c.l.b16 %v679
        %v783 = vunpack.c.l.b16 %v680
        %v784 = vunpack.c.l.b16 %v681
        %v785 = vunpack.c.l.b16 %v682
        %v786 = vunpack.c.l.b16 %v683
        %v787 = vunpack.c.l.b16 %v684
        %v788 = vunpack.c.l.b16 %v685
        %v789 = vunpack.c.l.b16 %v686
        %v790 = vunpack.c.l.b16 %v687
        %v791 = vunpack.c.l.b16 %v688
        %v792 = vunpack.c.l.b16 %v689
        %v793 = vunpack.c.l.b16 %v690
        %v794 = vunpack.c.l.b16 %v691
        %v795 = vunpack.c.l.b16 %v692
        %v796 = vunpack.c.l.b16 %v693
        %v797 = vunpack.c.l.b16 %v694
        %v798 = vunpack.c.l.b16 %v695
        %v799 = vunpack.c.l.b16 %v696
        %v800 = vunpack.c.l.b16 %v697
        %v801 = vunpack.c.l.b16 %v698
        %v802 = vunpack.c.l.b16 %v699
        %v803 = vunpack.c.l.b16 %v700
        %v804 = vpack.c.b16 %v757, %v756
        %v805 = vpack.c.b16 %v759, %v758
        %v806 = vpack.c.b16 %v761, %v760
        %v807 = vpack.c.b16 %v763, %v762
        %v808 = vpack.c.b16 %v765, %v764
        %v809 = vpack.c.b16 %v767, %v766
        %v810 = vpack.c.b16 %v769, %v768
        %v811 = vpack.c.b16 %v771, %v770
        %v812 = vpack.c.b16 %v773, %v772
        %v813 = vpack.c.b16 %v775, %v774
        %v814 = vpack.c.b16 %v777, %v776
        %v815 = vpack.c.b16 %v779, %v778
        %v816 = vpack.c.b16 %v781, %v780
        %v817 = vpack.c.b16 %v783, %v782
        %v818 = vpack.c.b16 %v785, %v784
        %v819 = vpack.c.b16 %v787, %v786
        %v820 = vpack.c.b16 %v789, %v788
        %v821 = vpack.c.b16 %v791, %v790
        %v822 = vpack.c.b16 %v793, %v792
        %v823 = vpack.c.b16 %v795, %v794
        %v824 = vpack.c.b16 %v797, %v796
        %v825 = vpack.c.b16 %v799, %v798
        %v826 = vpack.c.b16 %v801, %v800
        %v827 = vpack.c.b16 %v803, %v802
        %852 = vmatprep.subr.bf16.mxu0 0
        %853 = vmatpush1.bf16.msra.mxu0 %v804
        %854 = vmatprep.subr.bf16.mxu0 0
        %855 = vmatpush1.bf16.msra.mxu0 %v805
        %856 = vmatprep.subr.bf16.mxu0 0
        %857 = vmatpush1.bf16.msra.mxu0 %v806
        %858 = vmatprep.subr.bf16.mxu0 0
        %859 = vmatpush1.bf16.msra.mxu0 %v807
        %860 = vmatprep.subr.bf16.mxu0 0
        %861 = vmatpush1.bf16.msra.mxu0 %v808
        %862 = vmatprep.subr.bf16.mxu0 0
        %863 = vmatpush1.bf16.msra.mxu0 %v809
        %864 = vmatprep.subr.bf16.mxu0 0
        %865 = vmatpush1.bf16.msra.mxu0 %v810
        %866 = vmatprep.subr.bf16.mxu0 0
        %867 = vmatpush1.bf16.msra.mxu0 %v811
        %868 = vmatprep.subr.bf16.mxu0 0
        %869 = vmatpush1.bf16.msra.mxu0 %v812
        %870 = vmatprep.subr.bf16.mxu0 0
        %871 = vmatpush1.bf16.msra.mxu0 %v813
        %872 = vmatprep.subr.bf16.mxu0 0
        %873 = vmatpush1.bf16.msra.mxu0 %v814
        %874 = vmatprep.subr.bf16.mxu0 0
        %875 = vmatpush1.bf16.msra.mxu0 %v815
        %876 = vmatprep.subr.bf16.mxu0 0
        %877 = vmatpush1.bf16.msra.mxu0 %v816
        %878 = vmatprep.subr.bf16.mxu0 0
        %879 = vmatpush1.bf16.msra.mxu0 %v817
        %880 = vmatprep.subr.bf16.mxu0 0
        %881 = vmatpush1.bf16.msra.mxu0 %v818
        %882 = vmatprep.subr.bf16.mxu0 0
        %883 = vmatpush1.bf16.msra.mxu0 %v819
        %884 = vmatprep.mubr.bf16.mxu0 %v648
        %885 = vmatmul.mubr.bf16.gmra.mrb[0].mxu0 %v647
        %v886 = vpop.f32.mrb[0].mxu0
        %v887 = vadd.f32 %v706, %v886
        %v888 = vpop.f32.mrb[0].mxu0
        %v889 = vpop.f32.mrb[0].mxu0
        %v890 = vadd.f32 %v706, %v889
        %v891 = vpop.f32.mrb[0].mxu0
        %892 = vmatprep.mubr.bf16.mxu0 %v651
        %893 = vmatmul.mubr.bf16.gmra.mrb[0].mxu0 %v650
        %v894 = vpop.f32.mrb[0].mxu0
        %v895 = vadd.f32 %v706, %v894
        %v896 = vpop.f32.mrb[0].mxu0
        %v897 = vpop.f32.mrb[0].mxu0
        %v898 = vadd.f32 %v706, %v897
        %v899 = vpop.f32.mrb[0].mxu0
        %900 = vdwg.mxu0
        %901 = vmatprep.subr.bf16.mxu0 0
        %902 = vmatpush1.bf16.msra.mxu0 %v820
        %903 = vmatprep.subr.bf16.mxu0 0
        %904 = vmatpush1.bf16.msra.mxu0 %v821
        %905 = vmatprep.subr.bf16.mxu0 0
        %906 = vmatpush1.bf16.msra.mxu0 %v822
        %907 = vmatprep.subr.bf16.mxu0 0
        %908 = vmatpush1.bf16.msra.mxu0 %v823
        %909 = vmatprep.subr.bf16.mxu0 0
        %910 = vmatpush1.bf16.msra.mxu0 %v824
        %911 = vmatprep.subr.bf16.mxu0 0
        %912 = vmatpush1.bf16.msra.mxu0 %v825
        %913 = vmatprep.subr.bf16.mxu0 0
        %914 = vmatpush1.bf16.msra.mxu0 %v826
        %915 = vmatprep.subr.bf16.mxu0 0
        %916 = vmatpush1.bf16.msra.mxu0 %v827
        %917 = vmatprep.subr.bf16.mxu0 0
        %918 = vmatpush1.bf16.msra.mxu0 0
        %919 = vmatprep.subr.bf16.mxu0 0
        %920 = vmatpush1.bf16.msra.mxu0 0
        %921 = vmatprep.subr.bf16.mxu0 0
        %922 = vmatpush1.bf16.msra.mxu0 0
        %923 = vmatprep.subr.bf16.mxu0 0
        %924 = vmatpush1.bf16.msra.mxu0 0
        %925 = vmatprep.subr.bf16.mxu0 0
        %926 = vmatpush1.bf16.msra.mxu0 0
        %927 = vmatprep.subr.bf16.mxu0 0
        %928 = vmatpush1.bf16.msra.mxu0 0
        %929 = vmatprep.subr.bf16.mxu0 0
        %930 = vmatpush1.bf16.msra.mxu0 0
        %931 = vmatprep.subr.bf16.mxu0 0
        %932 = vmatpush1.bf16.msra.mxu0 0
        %933 = vmatprep.mubr.bf16.mxu0 0
        %934 = vmatmul.mubr.bf16.gmra.mrb[0].mxu0 %v649
        %v935 = vpop.f32.mrb[0].mxu0
        %v936 = vadd.f32 %v887, %v935
        %v937 = vpop.f32.mrb[0].mxu0
        %v938 = vpop.f32.mrb[0].mxu0
        %v939 = vadd.f32 %v890, %v938
        %v940 = vpop.f32.mrb[0].mxu0
        %941 = vmatprep.mubr.bf16.mxu0 0
        %942 = vmatmul.mubr.bf16.gmra.mrb[0].mxu0 %v652
        %v943 = vpop.f32.mrb[0].mxu0
        %v944 = vadd.f32 %v895, %v943
        %v945 = vpop.f32.mrb[0].mxu0
        %v946 = vpop.f32.mrb[0].mxu0
        %v947 = vadd.f32 %v898, %v946
        %v948 = vpop.f32.mrb[0].mxu0
        %949 = vdwg.mxu0
        %v950 = vtanh.pop %v936
        %v951 = vtanh.pop %v939
        %v952 = vtanh.pop %v944
        %v953 = vtanh.pop %v947
        %v954 = vpack.c.bf16 %v951, %v950
        %v955 = vpack.c.bf16 %v953, %v952
        %v956 = vld [vmem:[#allocation11] sm:$0xf]
        %v957 = vld [vmem:[#allocation11 + $0x4] sm:$0xf]
        %v958 = vld [vmem:[#allocation11 + $0x8] sm:$0xf]
        %v959 = vld [vmem:[#allocation11 + $0xc] sm:$0xf]
        %v960 = vld [vmem:[#allocation11 + $0x10] sm:$0xf]
        %v961 = vld [vmem:[#allocation11 + $0x14] sm:$0xf]
        %v962 = vld [vmem:[#allocation11 + $0x18] sm:$0xf]
        %v963 = vld [vmem:[#allocation11 + $0x1c] sm:$0xf]
        %v964 = vld [vmem:[#allocation11 + $0x20] sm:$0xf]
        %v965 = vld [vmem:[#allocation11 + $0x24] sm:$0xf]
        %v966 = vld [vmem:[#allocation11 + $0x28] sm:$0xf]
        %v967 = vld [vmem:[#allocation11 + $0x2c] sm:$0xf]
        %v968 = vld [vmem:[#allocation11 + $0x30] sm:$0xf]
        %v969 = vld [vmem:[#allocation11 + $0x34] sm:$0xf]
        %v970 = vld [vmem:[#allocation11 + $0x38] sm:$0xf]
        %v971 = vld [vmem:[#allocation11 + $0x3c] sm:$0xf]
        %v972 = vld [vmem:[%s8] sm:$0x1]
        %v974 = vlaneseq
        %v975 = vshrl.u32 %v974, 7
        %v976 = vsub.s32 0, %v975
        %v977 = vrot.slane %v972, %v976
        %v995 = vunpack.c.l.b16 %v956
        %v996 = vunpack.c.l.b16 %v957
        %v997 = vunpack.c.l.b16 %v958
        %v998 = vunpack.c.l.b16 %v959
        %v999 = vunpack.c.l.b16 %v960
        %v1000 = vunpack.c.l.b16 %v961
        %v1001 = vunpack.c.l.b16 %v962
        %v1002 = vunpack.c.l.b16 %v963
        %v1003 = vunpack.c.l.b16 %v964
        %v1004 = vunpack.c.l.b16 %v965
        %v1005 = vunpack.c.l.b16 %v966
        %v1006 = vunpack.c.l.b16 %v967
        %v1007 = vunpack.c.l.b16 %v968
        %v1008 = vunpack.c.l.b16 %v969
        %v1009 = vunpack.c.l.b16 %v970
        %v1010 = vunpack.c.l.b16 %v971
        %v1011 = vpack.c.b16 %v996, %v995
        %v1012 = vpack.c.b16 %v998, %v997
        %v1013 = vpack.c.b16 %v1000, %v999
        %v1014 = vpack.c.b16 %v1002, %v1001
        %v1015 = vpack.c.b16 %v1004, %v1003
        %v1016 = vpack.c.b16 %v1006, %v1005
        %v1017 = vpack.c.b16 %v1008, %v1007
        %v1018 = vpack.c.b16 %v1010, %v1009
        %1027 = vmatprep.subr.bf16.mxu0 0
        %1028 = vmatpush1.bf16.msra.mxu0 %v1011
        %1029 = vmatprep.subr.bf16.mxu0 0
        %1030 = vmatpush1.bf16.msra.mxu0 %v1012
        %1031 = vmatprep.subr.bf16.mxu0 0
        %1032 = vmatpush1.bf16.msra.mxu0 %v1013
        %1033 = vmatprep.subr.bf16.mxu0 0
        %1034 = vmatpush1.bf16.msra.mxu0 %v1014
        %1035 = vmatprep.subr.bf16.mxu0 0
        %1036 = vmatpush1.bf16.msra.mxu0 %v1015
        %1037 = vmatprep.subr.bf16.mxu0 0
        %1038 = vmatpush1.bf16.msra.mxu0 %v1016
        %1039 = vmatprep.subr.bf16.mxu0 0
        %1040 = vmatpush1.bf16.msra.mxu0 %v1017
        %1041 = vmatprep.subr.bf16.mxu0 0
        %1042 = vmatpush1.bf16.msra.mxu0 %v1018
        %1043 = vmatprep.subr.bf16.mxu0 0
        %1044 = vmatpush1.bf16.msra.mxu0 0
        %1045 = vmatprep.subr.bf16.mxu0 0
        %1046 = vmatpush1.bf16.msra.mxu0 0
        %1047 = vmatprep.subr.bf16.mxu0 0
        %1048 = vmatpush1.bf16.msra.mxu0 0
        %1049 = vmatprep.subr.bf16.mxu0 0
        %1050 = vmatpush1.bf16.msra.mxu0 0
        %1051 = vmatprep.subr.bf16.mxu0 0
        %1052 = vmatpush1.bf16.msra.mxu0 0
        %1053 = vmatprep.subr.bf16.mxu0 0
        %1054 = vmatpush1.bf16.msra.mxu0 0
        %1055 = vmatprep.subr.bf16.mxu0 0
        %1056 = vmatpush1.bf16.msra.mxu0 0
        %1057 = vmatprep.subr.bf16.mxu0 0
        %1058 = vmatpush1.bf16.msra.mxu0 0
        %1059 = vmatprep.mubr.bf16.mxu0 0
        %1060 = vmatmul.mubr.bf16.gmra.mrb[0].mxu0 %v954
        %v1061 = vpop.f32.mrb[0].mxu0
        %v1062 = vadd.f32 %v977, %v1061
        %v1063 = vpop.f32.mrb[0].mxu0
        %v1064 = vpop.f32.mrb[0].mxu0
        %v1065 = vadd.f32 %v977, %v1064
        %v1066 = vpop.f32.mrb[0].mxu0
        %1067 = vmatprep.mubr.bf16.mxu0 0
        %1068 = vmatmul.mubr.bf16.gmra.mrb[0].mxu0 %v955
        %v1069 = vpop.f32.mrb[0].mxu0
        %v1070 = vadd.f32 %v977, %v1069
        %v1071 = vpop.f32.mrb[0].mxu0
        %v1072 = vpop.f32.mrb[0].mxu0
        %v1073 = vadd.f32 %v977, %v1072
        %v1074 = vpop.f32.mrb[0].mxu0
        %1075 = vdwg.mxu0
        %vm1076 = vcmask 23552
        %v1077 = vsel %vm1076, %v1062, -inf
        %1078 = vmax.xlane.f32.xlu0 %v1077
        %v1079 = vpop.xlane.xlu0 %1078
        %v1080 = vsel %vm1076, %v1065, -inf
        %1081 = vmax.xlane.f32.xlu0 %v1080
        %v1082 = vpop.xlane.xlu0 %1081
        %v1083 = vsel %vm1076, %v1070, -inf
        %1084 = vmax.xlane.f32.xlu0 %v1083
        %v1085 = vpop.xlane.xlu0 %1084
        %v1086 = vsel %vm1076, %v1073, -inf
        %1087 = vmax.xlane.f32.xlu0 %v1086
        %v1088 = vpop.xlane.xlu0 %1087
        %v1089 = vsub.f32 %v1062, %v1079
        %v1090 = vsub.f32 %v1065, %v1082
        %v1091 = vsub.f32 %v1070, %v1085
        %v1092 = vsub.f32 %v1073, %v1088
        %v1093 = vmul.f32 %v1089, 1.442695
        %v1094 = vpow.pop %v1093
        %v1095 = vmul.f32 %v1090, 1.442695
        %v1096 = vpow.pop %v1095
        %v1097 = vmul.f32 %v1091, 1.442695
        %v1098 = vpow.pop %v1097
        %v1099 = vmul.f32 %v1092, 1.442695
        %v1100 = vpow.pop %v1099
        %v1101 = vsel %vm1076, %v1094, 0.0
        %1102 = vadd.xlane.f32.xlu0 %v1101
        %v1103 = vpop.xlane.xlu0 %1102
        %v1104 = vsel %vm1076, %v1096, 0.0
        %1105 = vadd.xlane.f32.xlu0 %v1104
        %v1106 = vpop.xlane.xlu0 %1105
        %v1107 = vsel %vm1076, %v1098, 0.0
        %1108 = vadd.xlane.f32.xlu0 %v1107
        %v1109 = vpop.xlane.xlu0 %1108
        %v1110 = vsel %vm1076, %v1100, 0.0
        %1111 = vadd.xlane.f32.xlu0 %v1110
        %v1112 = vpop.xlane.xlu0 %1111
        %v1113 = vrcp.pop %v1103
        %v1114 = vrcp.pop %v1106
        %v1115 = vrcp.pop %v1109
        %v1116 = vrcp.pop %v1112
        %v1117 = vmul.f32 %v1094, %v1113
        %v1118 = vmul.f32 %v1096, %v1114
        %v1119 = vmul.f32 %v1098, %v1115
        %v1120 = vmul.f32 %v1100, %v1116
        %1122 = vset.pattern.permute.xlu0 0
        %1123 = vperm.xlu0 %1122, %v1117
        %v1124 = vpop.permute.xlu0 %1123
        %1127 = vset.pattern.permute.xlu0 0
        %1128 = vperm.xlu0 %1127, %v1118
        %v1129 = vpop.permute.xlu0 %1128
        %1132 = vset.pattern.permute.xlu0 0
        %1133 = vperm.xlu0 %1132, %v1119
        %v1134 = vpop.permute.xlu0 %1133
        %1137 = vset.pattern.permute.xlu0 0
        %1138 = vperm.xlu0 %1137, %v1120
        %v1139 = vpop.permute.xlu0 %1138
        %v1141 = vmul.f32 %v477, %v1124
        %v1142 = vmul.f32 %v478, %v1129
        %v1143 = vmul.f32 %v479, %v1134
        %v1144 = vmul.f32 %v480, %v1139
        %1145 = vst [vmem:[%s471] sm:$0xff] %v1141
        %1146 = vst [vmem:[%s471 + $0x18] sm:$0xff] %v1142
        %1147 = vst [vmem:[%s471 + $0x30] sm:$0xff] %v1143
        %1148 = vst [vmem:[%s471 + $0x48] sm:$0xff] %v1144
        %v1149 = vld [vmem:[%s406] sm:$0xff]
        %v1150 = vld [vmem:[%s406 + $0x8] sm:$0xff]
        %v1151 = vld [vmem:[%s406 + $0x10] sm:$0xff]
        %v1152 = vld [vmem:[%s406 + $0x18] sm:$0xff]
        %1153 = vset.pattern.permute.xlu0 1
        %1154 = vperm.xlu0 %1153, %v1117
        %v1155 = vpop.permute.xlu0 %1154
        %1157 = vset.pattern.permute.xlu0 1
        %1158 = vperm.xlu0 %1157, %v1118
        %v1159 = vpop.permute.xlu0 %1158
        %1161 = vset.pattern.permute.xlu0 1
        %1162 = vperm.xlu0 %1161, %v1119
        %v1163 = vpop.permute.xlu0 %1162
        %1165 = vset.pattern.permute.xlu0 1
        %1166 = vperm.xlu0 %1165, %v1120
        %v1167 = vpop.permute.xlu0 %1166
        %v1169 = vmul.f32 %v1149, %v1155
        %v1170 = vmul.f32 %v1150, %v1159
        %v1171 = vmul.f32 %v1151, %v1163
        %v1172 = vmul.f32 %v1152, %v1167
        %1173 = vst [vmem:[%s471 + $0x8] sm:$0xff] %v1169
        %1174 = vst [vmem:[%s471 + $0x20] sm:$0xff] %v1170
        %1175 = vst [vmem:[%s471 + $0x38] sm:$0xff] %v1171
        %1176 = vst [vmem:[%s471 + $0x50] sm:$0xff] %v1172
        %v1177 = vld [vmem:[%s415] sm:$0xff]
        %v1178 = vld [vmem:[%s415 + $0x8] sm:$0xff]
        %v1179 = vld [vmem:[%s415 + $0x10] sm:$0xff]
        %v1180 = vld [vmem:[%s415 + $0x18] sm:$0xff]
        %1181 = vset.pattern.permute.xlu0 2
        %1182 = vperm.xlu0 %1181, %v1117
        %v1183 = vpop.permute.xlu0 %1182
        %1185 = vset.pattern.permute.xlu0 2
        %1186 = vperm.xlu0 %1185, %v1118
        %v1187 = vpop.permute.xlu0 %1186
        %1189 = vset.pattern.permute.xlu0 2
        %1190 = vperm.xlu0 %1189, %v1119
        %v1191 = vpop.permute.xlu0 %1190
        %1193 = vset.pattern.permute.xlu0 2
        %1194 = vperm.xlu0 %1193, %v1120
        %v1195 = vpop.permute.xlu0 %1194
        %v1197 = vmul.f32 %v1177, %v1183
        %v1198 = vmul.f32 %v1178, %v1187
        %v1199 = vmul.f32 %v1179, %v1191
        %v1200 = vmul.f32 %v1180, %v1195
        %1201 = vst [vmem:[%s471 + $0x10] sm:$0xff] %v1197
        %1202 = vst [vmem:[%s471 + $0x28] sm:$0xff] %v1198
        %1203 = vst [vmem:[%s471 + $0x40] sm:$0xff] %v1199
        %1204 = vst [vmem:[%s471 + $0x58] sm:$0xff] %v1200
        %s1205 = sand.u32 %s243, 1
        %s1206 = scalar_lea.sflag [#allocation4], %s1205
        %s1207 = sand.u32 %s243, 1
        %s1208 = smul.addr %s1207, 96
        %s1209 = scalar_lea.vmem [#allocation13], %s1208
        // Predicated region
        $region81: #{tpu_custom_call.1} parent=55 // pred_check
          %p1210 = pneg %p253
        $region82: #{tpu_custom_call.1} parent=55 // pred_check_branch
          %1212 = sbr.rel (%p1210) target = $region84
        $region83: #{tpu_custom_call.1} parent=55 // pred_region
          %s1213 = smul.u32 4, %s31
          %s1215 = ssub.s32 1536, 1536
          %1216 = vsyncadd %s1206, %s1215
          %s1217 = smul.addr %s1213, 3
          %s1218 = smul.addr %s1217, 128
          %s1219 = scalar_lea.hbm %s9, %s1218
          %s1220 = sshll.u32 %s1209, 4
          %s1221 = int_to_ptr.vmem [resolvable:$true] %s1220
          %1226 = dma.vmem_to_hbm [thread:$0]  %s1221, 1536, %s1219, %s1206, 384, 384, 24
        $region84: #{tpu_custom_call.1} parent=55 // pred_fallthru
          _
      $region56: #{tpu_custom_call.1} parent=5 // pred_fallthru
        _
      %p1227 = scmp.le.s32.totalorder 2, %s26
      // Predicated region
      $region85: #{tpu_custom_call.1} parent=5 // pred_check
        %p1228 = pneg %p1227
      $region86: #{tpu_custom_call.1} parent=5 // pred_check_branch
        %1230 = sbr.rel (%p1228) target = $region88
      $region87: #{tpu_custom_call.1} parent=5 // pred_region
        %s1231 = ssub.s32 %s26, 2
        // Predicated region
        $region89: #{tpu_custom_call.1} parent=87 // pred_check
          %p1232 = pneg %p259
        $region90: #{tpu_custom_call.1} parent=87 // pred_check_branch
          %1234 = sbr.rel (%p1232) target = $region92
        $region91: #{tpu_custom_call.1} parent=87 // pred_region
          %s1235 = sand.u32 %s244, 1
          %s1236 = scalar_lea.sflag [#allocation4], %s1235
          %s1237 = sand.u32 %s244, 1
          %s1238 = smul.addr %s1237, 96
          %s1239 = scalar_lea.vmem [#allocation13], %s1238
          %1240 = dma.done %s1236, 1536
        $region92: #{tpu_custom_call.1} parent=87 // pred_fallthru
          _
      $region88: #{tpu_custom_call.1} parent=5 // pred_fallthru
        _
    $region6: #{tpu_custom_call.1} parent=1 // loop_footer
      %s30 = sadd.s32 1, %s26
    $region7: #{tpu_custom_call.1} parent=1 // loop_footer_branch
      %25 = sbr.rel target = $region3
    $region8: #{tpu_custom_call.1} parent=1 // loop_exit
      _
    %1241 = vsyncpa [#allocation3], 1
    %s1242 = scalar_lea.sflag [#allocation3], 1
    %1243 = vsyncpa %s1242, 1
    %1244 = vsyncpa [#allocation6], 1
    %s1245 = scalar_lea.sflag [#allocation6], 1
    %1246 = vsyncpa %s1245, 1
    %1247 = vsyncpa [#allocation9], 1
    %1248 = vsyncpa [#allocation12], 1
    %1249 = vsyncpa [#allocation4], 1
    %s1250 = scalar_lea.sflag [#allocation4], 1
    %1251 = vsyncpa %s1250, 1

</llo_original>
